<compile_context>
chip_gen: v6e
topology: v6e:2x2x1
jax: 0.10.0
libtpu: 0.0.40
codegen_flags: <defaults>
</compile_context>

<pallas_src>
import numpy as np
import jax
import jax.numpy as jnp
from jax.experimental import pallas as pl
from jax.experimental.pallas import tpu as pltpu

# ---------------- small, module-consistent shapes ----------------
N, C, T, V = 2, 4, 8, 16     # batch, in_channels, time, vertices (NCHW: H=T, W=V)
S = 3                        # num_scales
O = 8                        # out_channels  -> O*V = 128 = one full lane row
BN_EPS = 1e-5


# -------- graph helpers (replicate MS-G3D numpy utilities) --------
def k_adjacency(A, k, with_self=False, self_factor=1):
    I = np.eye(len(A), dtype=A.dtype)
    if k == 0:
        return I
    Ak = np.minimum(np.linalg.matrix_power(A + I, k), 1) \
       - np.minimum(np.linalg.matrix_power(A + I, k - 1), 1)
    if with_self:
        Ak += (self_factor * I)
    return Ak


def normalize_adjacency_matrix(A):
    node_degrees = A.sum(-1)
    degs_inv_sqrt = np.power(node_degrees, -0.5)
    norm_degs_matrix = np.eye(len(node_degrees)) * degs_inv_sqrt
    return (norm_degs_matrix @ A @ norm_degs_matrix).astype(np.float32)


# ---------------------------- kernel ----------------------------
def msgcn_kernel(x_ref, k_ref, b_ref, o_ref):
    # x_ref: (N*T, C*V)   lane-dense LHS (row = n*T + t, col = c*V + v)
    # k_ref: (C*V, O*V)   fused operator K[c*V+v, o*V+v'] = sum_s W_s[o,c] * A_s[v',v]
    #                     (BatchNorm scale folded in at host time)
    # b_ref: (1, O*V)     effective bias broadcast across the (o,v') lane axis
    # o_ref: (N*T, O*V)   lane-dense output slab
    y = jnp.dot(x_ref[...], k_ref[...], preferred_element_type=jnp.float32)
    o_ref[...] = jnp.maximum(y + b_ref[...], 0.0).astype(o_ref.dtype)


def multiscale_graph_conv(x, Kmat, b_row):
    # x: (N, C, T, V) float32 (PyTorch NCHW).
    n, c, t, v = x.shape
    cv, ov = Kmat.shape
    o = ov // v
    rows = n * t
    # Tiny (~4 KiB) wrapper-side relayout: lane-dense LHS with C*V = 64 active lanes.
    x2 = jnp.transpose(x, (0, 2, 1, 3)).reshape(rows, cv)
    cost = pl.CostEstimate(
        flops=2 * rows * cv * ov,
        transcendentals=0,
        bytes_accessed=4 * (rows * cv + cv * ov + ov + rows * ov))
    out2 = pl.pallas_call(
        msgcn_kernel,
        out_shape=jax.ShapeDtypeStruct((rows, ov), jnp.float32),
        in_specs=[
            pl.BlockSpec(memory_space=pltpu.MemorySpace.VMEM),   # x slab      (16, 64)
            pl.BlockSpec(memory_space=pltpu.MemorySpace.VMEM),   # fused op    (64, 128)
            pl.BlockSpec(memory_space=pltpu.MemorySpace.VMEM),   # eff. bias   (1, 128)
        ],
        out_specs=pl.BlockSpec(memory_space=pltpu.MemorySpace.VMEM),
        cost_estimate=cost,
    )(x2, Kmat, b_row)
    # lane-dense (N*T, O*V) -> (N, T, O, V) -> NCHW (N, O, T, V)
    return jnp.transpose(out2.reshape(n, t, o, v), (0, 2, 1, 3))


# ------------- pure-JAX reference (PyTorch semantics) -------------
def reference(x, A_full, W_conv, b_conv, gamma, beta, mean, var):
    n, c, t, v = x.shape
    support = jnp.einsum('nctv,wv->nctw', x, A_full)            # x @ A.T
    support = support.reshape(n, c, t, S, v)
    support = jnp.transpose(support, (0, 3, 1, 2, 4)).reshape(n, S * c, t, v)
    out = jnp.einsum('nktv,ok->notv', support, W_conv) + b_conv[None, :, None, None]
    out = (out - mean[None, :, None, None]) * jax.lax.rsqrt(var[None, :, None, None] + BN_EPS)
    out = out * gamma[None, :, None, None] + beta[None, :, None, None]
    return jnp.maximum(out, 0.0)


if __name__ == "__main__":
    key = jax.random.PRNGKey(0)
    k_x, k_res, k_w, k_b = jax.random.split(key, 4)

    # Deterministic binary adjacency: ring graph over V joints.
    A_binary = np.zeros((V, V), dtype=np.float32)
    for i in range(V):
        A_binary[i, (i + 1) % V] = 1.0
        A_binary[(i + 1) % V, i] = 1.0

    # disentangled_agg=True path of __init__
    A_powers = [k_adjacency(A_binary, k, with_self=True) for k in range(S)]
    A_powers = np.concatenate([normalize_adjacency_matrix(g) for g in A_powers])  # (S*V, V)
    A_powers = jnp.asarray(A_powers, jnp.float32)

    # use_mask=True: A_res ~ U(-1e-6, 1e-6), same shape as A_powers
    A_res = jax.random.uniform(k_res, (S * V, V), jnp.float32, -1e-6, 1e-6)
    A_full = A_powers + A_res                                   # (S*V, V)

    # MLP: Conv2d(S*C -> O, kernel 1x1) + BatchNorm2d(O) + ReLU  (dropout=0 -> no-op)
    W_conv = jax.random.normal(k_w, (O, S * C), jnp.float32) * 0.1
    b_conv = jax.random.normal(k_b, (O,), jnp.float32) * 0.1
    gamma = jnp.ones((O,), jnp.float32)     # BN defaults, inference mode
    beta = jnp.zeros((O,), jnp.float32)
    mean = jnp.zeros((O,), jnp.float32)
    var = jnp.ones((O,), jnp.float32)

    # ---- parameter glue: fold BN + fuse (adjacency, conv weight) into one operator ----
    bn_scale = gamma / jnp.sqrt(var + BN_EPS)                                  # (O,)
    W_osc = (W_conv * bn_scale[:, None]).reshape(O, S, C)                      # (O, S, C)
    A_scales = A_full.reshape(S, V, V)                                         # A_s[v', v]
    # Kmat[c*V + v, o*V + v'] = sum_s W_osc[o, s, c] * A_s[v', v]   -> (C*V, O*V)
    Kmat = jnp.einsum('osc,suv->cvou', W_osc, A_scales).reshape(C * V, O * V)
    b_eff = (b_conv - mean) * bn_scale + beta                                  # (O,)
    b_row = jnp.broadcast_to(b_eff[:, None], (O, V)).reshape(1, O * V)         # (1, O*V)

    # TODO(synk): training-mode BatchNorm (batch statistics) and dropout>0 are not modeled.

    x = jax.random.normal(k_x, (N, C, T, V), jnp.float32)

    out = multiscale_graph_conv(x, Kmat, b_row)
    out = jax.block_until_ready(out)

    ref = reference(x, A_full, W_conv, b_conv, gamma, beta, mean, var)
    assert out.shape == (N, O, T, V), out.shape
    max_err = float(jnp.max(jnp.abs(out - ref)))
    assert jnp.allclose(out, ref, atol=1e-4, rtol=1e-4), max_err
    print("KERNEL_OK")
</pallas_src>

<mosaic_0001>
module attributes {stable_mosaic.version = 11 : i64} {
  func.func @msgcn_kernel(%arg0: memref<16x64xf32, #tpu.memory_space<vmem>>, %arg1: memref<64x128xf32, #tpu.memory_space<vmem>>, %arg2: memref<1x128xf32, #tpu.memory_space<vmem>>, %arg3: memref<16x128xf32, #tpu.memory_space<vmem>>) attributes {dimension_semantics = [], scalar_prefetch = 0 : i64, scratch_operands = 0 : i64, tpu.core_type = #tpu.core_type<tc>} {
    %c0 = arith.constant 0 : index
    %c0_0 = arith.constant 0 : index
    %0 = vector.load %arg0[%c0, %c0_0] : memref<16x64xf32, #tpu.memory_space<vmem>>, vector<16x64xf32>
    %c0_1 = arith.constant 0 : index
    %c0_2 = arith.constant 0 : index
    %1 = vector.load %arg1[%c0_1, %c0_2] : memref<64x128xf32, #tpu.memory_space<vmem>>, vector<64x128xf32>
    %cst = arith.constant dense<0.000000e+00> : vector<16x128xf32>
    %2 = tpu.matmul %0, %1, %cst {dimension_numbers = #tpu.dot_dimension_numbers<[1], [0], [0], [1], [0, 0, 1, 1], [], []>} : vector<16x64xf32>, vector<64x128xf32>, vector<16x128xf32> -> vector<16x128xf32>
    %c0_3 = arith.constant 0 : index
    %c0_4 = arith.constant 0 : index
    %3 = vector.load %arg2[%c0_3, %c0_4] : memref<1x128xf32, #tpu.memory_space<vmem>>, vector<1x128xf32>
    %4 = vector.broadcast %3 : vector<1x128xf32> to vector<16x128xf32>
    %5 = arith.addf %2, %4 : vector<16x128xf32>
    %cst_5 = arith.constant 0.000000e+00 : f32
    %6 = vector.broadcast %cst_5 : f32 to vector<16x128xf32>
    %7 = arith.maximumf %5, %6 : vector<16x128xf32>
    %c0_6 = arith.constant 0 : index
    %c0_7 = arith.constant 0 : index
    %8 = vector.load %arg3[%c0_6, %c0_7] : memref<16x128xf32, #tpu.memory_space<vmem>>, vector<16x128xf32>
    tpu.vector_store %arg3[%c0_6, %c0_7], %7 {strides = array<i32>} : memref<16x128xf32, #tpu.memory_space<vmem>>, vector<16x128xf32>,
    return
  }
}

</mosaic_0001>

<llo_original>
// kernel: tpu_custom_call.1
$region0: #{tpu_custom_call.1}
  #allocation0 [shape = 'u32[]', space=smem, size = 0x4, offset = 0x4, fixed_abs, tag = 'smem constant byte address 0x4 - core index']
  #allocation1 [shape = 'u32[144,128]{1,0:T(1,128)}', space=vmem, size = 0x12000, scoped, tag = 'internal scratch']
  %s0 = inlined_call_operand.hbm [shape: f32[16,64], index: 0, kind: input, shape index: {}]
  %s1 = inlined_call_operand.hbm [shape: f32[64,128], index: 1, kind: input, shape index: {}]
  %s2 = inlined_call_operand.vmem [shape: f32[1,128], index: 2, kind: input, shape index: {}]
  %s3 = inlined_call_operand.hbm [shape: f32[16,128], index: 3, kind: output, shape index: {}]
  %s4 = sld [smem:[#allocation0]]
  $region30: #{tpu_custom_call.1} parent=0
    _
  %s6 = ssub.s32 1, %s4
  %s7 = scalar_select 0, %s6, %s4
  $region1: #{tpu_custom_call.1} parent=0
    #allocation2 [shape = 'u8[8192]{0}', space=vmem, size = 0x2000, scoped, tag = 'input window, operand 0, single buffered']
    #allocation3 [shape = 's32[1]{0}', space=sflag, size = 0x4, scoped, tag = 'scoped memory for tpu_custom_call.1']
    #allocation4 [shape = 's32[1]{0}', space=sflag, size = 0x4, scoped, tag = 'scoped memory for tpu_custom_call.1']
    #allocation5 [shape = 'u8[32768]{0}', space=vmem, size = 0x8000, scoped, tag = 'input window, operand 1, single buffered']
    #allocation6 [shape = 's32[1]{0}', space=sflag, size = 0x4, scoped, tag = 'scoped memory for tpu_custom_call.1']
    #allocation7 [shape = 'u8[8192]{0}', space=vmem, size = 0x2000, scoped, tag = 'output window, operand 0, single buffered']
    %8 = vsyncpa [#allocation3], 0
    %9 = vsyncpa [#allocation6], 0
    %10 = vsyncpa [#allocation4], 0
    // Predicated region
    $region2: #{tpu_custom_call.1} parent=1 // pred_check
      _
    $region3: #{tpu_custom_call.1} parent=1 // pred_check_branch
      %12 = sbr.rel (0) target = $region5
    $region4: #{tpu_custom_call.1} parent=1 // pred_region
      %s14 = ssub.s32 256, 256
      %15 = vsyncadd [#allocation3], %s14
      %s16 = sshll.u32 [#allocation2], 4
      %s17 = int_to_ptr.vmem [resolvable:$true] %s16
      %22 = dma.hbm_to_vmem [thread:$0]  %s0, 256, %s17, [#allocation3], 128, 128, 8
    $region5: #{tpu_custom_call.1} parent=1 // pred_fallthru
      _
    // Predicated region
    $region6: #{tpu_custom_call.1} parent=1 // pred_check
      _
    $region7: #{tpu_custom_call.1} parent=1 // pred_check_branch
      %24 = sbr.rel (0) target = $region9
    $region8: #{tpu_custom_call.1} parent=1 // pred_region
      %s26 = ssub.s32 1024, 1024
      %27 = vsyncadd [#allocation6], %s26
      %s28 = sshll.u32 [#allocation5], 4
      %s29 = int_to_ptr.vmem [resolvable:$true] %s28
      %34 = dma.hbm_to_vmem [thread:$0]  %s1, 1024, %s29, [#allocation6], 128, 128, 8
    $region9: #{tpu_custom_call.1} parent=1 // pred_fallthru
      _
    // Predicated region
    $region10: #{tpu_custom_call.1} parent=1 // pred_check
      _
    $region11: #{tpu_custom_call.1} parent=1 // pred_check_branch
      %36 = sbr.rel (0) target = $region13
    $region12: #{tpu_custom_call.1} parent=1 // pred_region
      _
    $region13: #{tpu_custom_call.1} parent=1 // pred_fallthru
      _
    // Predicated region
    $region14: #{tpu_custom_call.1} parent=1 // pred_check
      _
    $region15: #{tpu_custom_call.1} parent=1 // pred_check_branch
      %38 = sbr.rel (0) target = $region17
    $region16: #{tpu_custom_call.1} parent=1 // pred_region
      %39 = dma.done [#allocation3], 256
    $region17: #{tpu_custom_call.1} parent=1 // pred_fallthru
      _
    // Predicated region
    $region18: #{tpu_custom_call.1} parent=1 // pred_check
      _
    $region19: #{tpu_custom_call.1} parent=1 // pred_check_branch
      %41 = sbr.rel (0) target = $region21
    $region20: #{tpu_custom_call.1} parent=1 // pred_region
      %42 = dma.done [#allocation6], 1024
    $region21: #{tpu_custom_call.1} parent=1 // pred_fallthru
      _
    %v43 = vld [vmem:[#allocation2] sm:$0xff]
    %v44 = vld [vmem:[#allocation2 + $0x8] sm:$0xff]
    %v45 = vld [vmem:[#allocation5] sm:$0xff]
    %v46 = vld [vmem:[#allocation5 + $0x8] sm:$0xff]
    %v47 = vld [vmem:[#allocation5 + $0x10] sm:$0xff]
    %v48 = vld [vmem:[#allocation5 + $0x18] sm:$0xff]
    %v49 = vld [vmem:[#allocation5 + $0x20] sm:$0xff]
    %v50 = vld [vmem:[#allocation5 + $0x28] sm:$0xff]
    %v51 = vld [vmem:[#allocation5 + $0x30] sm:$0xff]
    %v52 = vld [vmem:[#allocation5 + $0x38] sm:$0xff]
    %v53 = vld [vmem:[%s2] sm:$0x1]
    %v55 = vlaneseq
    %v56 = vshrl.u32 %v55, 7
    %v57 = vsub.s32 0, %v56
    %v58 = vrot.slane %v53, %v57
    %vm60 = vcmask 523264
    %v62 = vsel %vm60, %v43, 0
    %v65 = vsel %vm60, %v44, 0
    %67 = vmatprep.subr.mxu0 0.0
    %68 = vmatpush1.msra.mxu0 0.0
    %69 = vmatprep.subr.mxu0 0.0
    %70 = vmatpush1.msra.mxu0 0.0
    %71 = vmatprep.subr.mxu0 0.0
    %72 = vmatpush1.msra.mxu0 0.0
    %73 = vmatprep.subr.mxu0 0.0
    %74 = vmatpush1.msra.mxu0 0.0
    %75 = vmatprep.subr.mxu0 0.0
    %76 = vmatpush1.msra.mxu0 0.0
    %77 = vmatprep.subr.mxu0 0.0
    %78 = vmatpush1.msra.mxu0 0.0
    %79 = vmatprep.subr.mxu0 0.0
    %80 = vmatpush1.msra.mxu0 0.0
    %81 = vmatprep.subr.mxu0 0.0
    %82 = vmatpush1.msra.mxu0 0.0
    %83 = vmatprep.subr.mxu0 0.0
    %84 = vmatpush1.msra.mxu0 %v52
    %85 = vmatprep.subr.mxu0 0.0
    %86 = vmatpush1.msra.mxu0 %v51
    %87 = vmatprep.subr.mxu0 0.0
    %88 = vmatpush1.msra.mxu0 %v50
    %89 = vmatprep.subr.mxu0 0.0
    %90 = vmatpush1.msra.mxu0 %v49
    %91 = vmatprep.subr.mxu0 0.0
    %92 = vmatpush1.msra.mxu0 %v48
    %93 = vmatprep.subr.mxu0 0.0
    %94 = vmatpush1.msra.mxu0 %v47
    %95 = vmatprep.subr.mxu0 0.0
    %96 = vmatpush1.msra.mxu0 %v46
    %97 = vmatprep.subr.mxu0 0.0
    %98 = vmatpush1.msra.mxu0 %v45
    %99 = vmatprep.subr.mxu0 0.0
    %100 = vmatpush2.msra.mxu0 0.0
    %101 = vmatprep.subr.mxu0 0.0
    %102 = vmatpush2.msra.mxu0 0.0
    %103 = vmatprep.subr.mxu0 0.0
    %104 = vmatpush2.msra.mxu0 0.0
    %105 = vmatprep.subr.mxu0 0.0
    %106 = vmatpush2.msra.mxu0 0.0
    %107 = vmatprep.subr.mxu0 0.0
    %108 = vmatpush2.msra.mxu0 0.0
    %109 = vmatprep.subr.mxu0 0.0
    %110 = vmatpush2.msra.mxu0 0.0
    %111 = vmatprep.subr.mxu0 0.0
    %112 = vmatpush2.msra.mxu0 0.0
    %113 = vmatprep.subr.mxu0 0.0
    %114 = vmatpush2.msra.mxu0 0.0
    %115 = vmatprep.subr.mxu0 0.0
    %116 = vmatpush2.msra.mxu0 0.0
    %117 = vmatprep.subr.mxu0 0.0
    %118 = vmatpush2.msra.mxu0 0.0
    %119 = vmatprep.subr.mxu0 0.0
    %120 = vmatpush2.msra.mxu0 0.0
    %121 = vmatprep.subr.mxu0 0.0
    %122 = vmatpush2.msra.mxu0 0.0
    %123 = vmatprep.subr.mxu0 0.0
    %124 = vmatpush2.msra.mxu0 0.0
    %125 = vmatprep.subr.mxu0 0.0
    %126 = vmatpush2.msra.mxu0 0.0
    %127 = vmatprep.subr.mxu0 0.0
    %128 = vmatpush2.msra.mxu0 0.0
    %129 = vmatprep.subr.mxu0 0.0
    %130 = vmatpush2.msra.mxu0 0.0
    %131 = vmatprep.mubr.f32.mxu0 0.0
    %132 = vmatmul.mubr.f32.gmra.mxu0 %v62
    %v133 = vpop.f32.mrf.mxu0
    %v134 = vadd.f32 %v58, %v133
    %v135 = vpop.f32.mrf.mxu0
    %136 = vmatprep.mubr.f32.mxu0 0.0
    %137 = vmatmul.mubr.f32.gmra.mxu0 %v65
    %v138 = vpop.f32.mrf.mxu0
    %v139 = vadd.f32 %v58, %v138
    %v140 = vpop.f32.mrf.mxu0
    %141 = vdwg.mxu0
    %v142 = vmax.f32 %v134, 0.0
    %v143 = vmax.f32 %v139, 0.0
    %144 = vst [vmem:[#allocation7] sm:$0xff] %v142
    %145 = vst [vmem:[#allocation7 + $0x8] sm:$0xff] %v143
    // Predicated region
    $region22: #{tpu_custom_call.1} parent=1 // pred_check
      _
    $region23: #{tpu_custom_call.1} parent=1 // pred_check_branch
      %147 = sbr.rel (0) target = $region25
    $region24: #{tpu_custom_call.1} parent=1 // pred_region
      %s149 = ssub.s32 256, 256
      %150 = vsyncadd [#allocation4], %s149
      %s151 = sshll.u32 [#allocation7], 4
      %s152 = int_to_ptr.vmem [resolvable:$true] %s151
      %157 = dma.vmem_to_hbm [thread:$0]  %s152, 256, %s3, [#allocation4], 128, 128, 8
    $region25: #{tpu_custom_call.1} parent=1 // pred_fallthru
      _
    // Predicated region
    $region26: #{tpu_custom_call.1} parent=1 // pred_check
      _
    $region27: #{tpu_custom_call.1} parent=1 // pred_check_branch
      %159 = sbr.rel (0) target = $region29
    $region28: #{tpu_custom_call.1} parent=1 // pred_region
      %160 = dma.done [#allocation4], 256
    $region29: #{tpu_custom_call.1} parent=1 // pred_fallthru
      _
    %161 = vsyncpa [#allocation3], 1
    %162 = vsyncpa [#allocation6], 1
    %163 = vsyncpa [#allocation4], 1

</llo_original>
